<compile_context>
chip_gen: v6e
topology: v6e:2x2x1
jax: 0.10.0
libtpu: 0.0.40
codegen_flags: <defaults>
</compile_context>

<pallas_src>
import math

import jax
import jax.numpy as jnp
from jax.experimental import pallas as pl
from jax.experimental.pallas import tpu as pltpu


# ----------------------------- host-side math -----------------------------
def _snake_variance(alpha):
    # 1 + (1 + exp(-8 a^2) - 2 exp(-4 a^2)) / (8 a^2)
    num = 1.0 + jnp.exp(-8.0 * alpha ** 2) - 2.0 * jnp.exp(-4.0 * alpha ** 2)
    return 1.0 + num / (8.0 * alpha ** 2)


_ALPHA_MAX_VAR = 0.5604532115
_MAX_STD = math.sqrt(
    1.0
    + (1.0 + math.exp(-8.0 * _ALPHA_MAX_VAR ** 2)
       - 2.0 * math.exp(-4.0 * _ALPHA_MAX_VAR ** 2))
    / (8.0 * _ALPHA_MAX_VAR ** 2)
)


def _choose_tiles(rows, lanes, itemsize):
    """Pick (TM, TN).

    TN: full lane width when <= 2048 (== array dim, always layout-legal),
        else 2048 (multiple of 128 -> unmasked lane-dense stores except at the
        boundary block).
    TM: multiple of 8 (or == rows), targeting ~2 MiB per x tile so
        double-buffered in+out fits comfortably in scoped VMEM everywhere.
    """
    if lanes <= 2048:
        tn = lanes
    else:
        tn = 2048
    target_bytes = 2 * 1024 * 1024
    tm = max(8, target_bytes // max(tn * itemsize, 1))
    tm = (tm // 8) * 8
    if tm >= rows:
        tm = rows                       # == full dim -> always layout-legal
    return tm, tn


# ------------------------------- kernels -----------------------------------
def _snake_kernel(x_ref, a_ref, ia_ref, o_ref):
    # out = x + sin(a*x)^2 * (1/a)        (no correction)
    x = x_ref[...].astype(jnp.float32)          # (TM, TN)
    a = a_ref[...]                              # (TM, 1) f32, lane-broadcast
    s = jnp.sin(a * x)
    o_ref[...] = (x + s * s * ia_ref[...]).astype(o_ref.dtype)


def _snake_kernel_corr(x_ref, a_ref, ia_ref, ic_ref, o_ref):
    # out = (x + sin(a*x)^2 * (1/a)) * (1/corr)
    x = x_ref[...].astype(jnp.float32)
    a = a_ref[...]
    s = jnp.sin(a * x)
    o_ref[...] = ((x + s * s * ia_ref[...]) * ic_ref[...]).astype(o_ref.dtype)


# ------------------------------- wrapper -----------------------------------
def snake_forward(x, alpha, correction=None):
    """x: (N, C, H, W), alpha: (C,).

    correction: None | 'std' | 'max' | float, matching snake_correction().
    """
    N, C, H, W = x.shape
    R, L = N * C, H * W
    dtype = x.dtype
    itemsize = jnp.dtype(dtype).itemsize

    tm, tn = _choose_tiles(R, L, itemsize)
    grid = (pl.cdiv(R, tm), pl.cdiv(L, tn))

    # x slab (no padding copy: partial boundary blocks are handled by Pallas)
    x2 = x.reshape(R, L)

    # per-row constants in f32 (tiny: R x 1)
    alpha_f32 = alpha.astype(jnp.float32)
    a_rows = jnp.broadcast_to(alpha_f32[None, :], (N, C)).reshape(R, 1)
    ia_rows = jnp.broadcast_to((1.0 / alpha_f32)[None, :], (N, C)).reshape(R, 1)

    x_spec = pl.BlockSpec((tm, tn), lambda i, j: (i, j))
    col_spec = pl.BlockSpec((tm, 1), lambda i, j: (i, 0))
    out_spec = pl.BlockSpec((tm, tn), lambda i, j: (i, j))
    cparams = pltpu.CompilerParams(
        dimension_semantics=("parallel", "parallel"))

    if correction is None:
        out2 = pl.pallas_call(
            _snake_kernel,
            out_shape=jax.ShapeDtypeStruct((R, L), dtype),
            grid=grid,
            in_specs=[x_spec, col_spec, col_spec],
            out_specs=out_spec,
            compiler_params=cparams,
        )(x2, a_rows, ia_rows)
    else:
        if correction == "std":
            corr_c = jnp.sqrt(_snake_variance(alpha_f32))
            ic_rows = jnp.broadcast_to((1.0 / corr_c)[None, :],
                                       (N, C)).reshape(R, 1)
        elif correction == "max":
            ic_rows = jnp.full((R, 1), 1.0 / _MAX_STD, dtype=jnp.float32)
        else:
            ic_rows = jnp.full((R, 1), 1.0 / float(correction),
                               dtype=jnp.float32)
        out2 = pl.pallas_call(
            _snake_kernel_corr,
            out_shape=jax.ShapeDtypeStruct((R, L), dtype),
            grid=grid,
            in_specs=[x_spec, col_spec, col_spec, col_spec],
            out_specs=out_spec,
            compiler_params=cparams,
        )(x2, a_rows, ia_rows, ic_rows)

    return out2.reshape(N, C, H, W)


# ------------------------------ reference ----------------------------------
def snake_reference(x, alpha, correction=None):
    a = alpha.reshape(1, -1, 1, 1).astype(jnp.float32)
    xf = x.astype(jnp.float32)
    out = xf + jnp.sin(a * xf) ** 2 / a
    if correction == "std":
        out = out / jnp.sqrt(_snake_variance(a))
    elif correction == "max":
        out = out / _MAX_STD
    elif correction is not None:
        out = out / float(correction)
    return out.astype(x.dtype)


if __name__ == "__main__":
    key = jax.random.PRNGKey(0)
    N, C, H, W = 2, 4, 16, 16
    x = jax.random.normal(key, (N, C, H, W), dtype=jnp.float32)

    # Deterministic parameter init, matching Snake(num_channels=C, init=0.5)
    alpha = 0.5 * jnp.ones((C,), dtype=jnp.float32)

    # correction=None (module default)
    out = jax.block_until_ready(snake_forward(x, alpha, correction=None))
    ref = snake_reference(x, alpha, correction=None)
    assert out.shape == x.shape and out.dtype == x.dtype
    assert jnp.allclose(out, ref, atol=1e-5, rtol=1e-5)

    # 'std' correction path
    out_std = jax.block_until_ready(snake_forward(x, alpha, correction="std"))
    ref_std = snake_reference(x, alpha, correction="std")
    assert jnp.allclose(out_std, ref_std, atol=1e-5, rtol=1e-5)

    # 'max' correction path
    out_max = jax.block_until_ready(snake_forward(x, alpha, correction="max"))
    ref_max = snake_reference(x, alpha, correction="max")
    assert jnp.allclose(out_max, ref_max, atol=1e-5, rtol=1e-5)

    # non-tile-aligned spatial extent (exercises partial boundary lane block)
    key2 = jax.random.PRNGKey(0)
    x_odd = jax.random.normal(key2, (2, 4, 50, 60), dtype=jnp.float32)
    out_odd = jax.block_until_ready(snake_forward(x_odd, alpha, "std"))
    ref_odd = snake_reference(x_odd, alpha, "std")
    assert out_odd.shape == x_odd.shape
    assert jnp.allclose(out_odd, ref_odd, atol=1e-5, rtol=1e-5)

    print("KERNEL_OK")
</pallas_src>

<mosaic_0001>
module attributes {stable_mosaic.version = 11 : i64} {
  func.func @_snake_kernel(%arg0: i32, %arg1: i32, %arg2: memref<8x256xf32, #tpu.memory_space<vmem>>, %arg3: memref<8x1xf32, #tpu.memory_space<vmem>>, %arg4: memref<8x1xf32, #tpu.memory_space<vmem>>, %arg5: memref<8x256xf32, #tpu.memory_space<vmem>>) attributes {dimension_semantics = [#tpu.dimension_semantics<parallel>, #tpu.dimension_semantics<parallel>], iteration_bounds = array<i64: 1, 1>, scalar_prefetch = 0 : i64, scratch_operands = 0 : i64, tpu.core_type = #tpu.core_type<tc>, window_params = [{transform_indices = @transform_0, window_bounds = array<i64: 8, 256>}, {transform_indices = @transform_1, window_bounds = array<i64: 8, 1>}, {transform_indices = @transform_2, window_bounds = array<i64: 8, 1>}, {transform_indices = @transform_3, window_bounds = array<i64: 8, 256>}]} {
    %c0 = arith.constant 0 : index
    %c0_0 = arith.constant 0 : index
    %0 = vector.load %arg2[%c0, %c0_0] : memref<8x256xf32, #tpu.memory_space<vmem>>, vector<8x256xf32>
    %c0_1 = arith.constant 0 : index
    %c0_2 = arith.constant 0 : index
    %1 = vector.load %arg3[%c0_1, %c0_2] : memref<8x1xf32, #tpu.memory_space<vmem>>, vector<8x1xf32>
    %2 = vector.broadcast %1 : vector<8x1xf32> to vector<8x256xf32>
    %3 = arith.mulf %2, %0 : vector<8x256xf32>
    %4 = math.sin %3 : vector<8x256xf32>
    %5 = arith.mulf %4, %4 : vector<8x256xf32>
    %c0_3 = arith.constant 0 : index
    %c0_4 = arith.constant 0 : index
    %6 = vector.load %arg4[%c0_3, %c0_4] : memref<8x1xf32, #tpu.memory_space<vmem>>, vector<8x1xf32>
    %7 = vector.broadcast %6 : vector<8x1xf32> to vector<8x256xf32>
    %8 = arith.mulf %5, %7 : vector<8x256xf32>
    %9 = arith.addf %0, %8 : vector<8x256xf32>
    %c0_5 = arith.constant 0 : index
    %c0_6 = arith.constant 0 : index
    %10 = vector.load %arg5[%c0_5, %c0_6] : memref<8x256xf32, #tpu.memory_space<vmem>>, vector<8x256xf32>
    tpu.vector_store %arg5[%c0_5, %c0_6], %9 {strides = array<i32>} : memref<8x256xf32, #tpu.memory_space<vmem>>, vector<8x256xf32>,
    return
  }
  func.func @transform_0(%arg0: i32, %arg1: i32) -> (i32, i32) {
    %c0_i32 = arith.constant 0 : i32
    return %arg0, %arg1 : i32, i32
  }
  func.func @transform_1(%arg0: i32, %arg1: i32) -> (i32, i32) {
    %c0_i32 = arith.constant 0 : i32
    %c0_i32_0 = arith.constant 0 : i32
    return %arg0, %c0_i32 : i32, i32
  }
  func.func @transform_2(%arg0: i32, %arg1: i32) -> (i32, i32) {
    %c0_i32 = arith.constant 0 : i32
    %c0_i32_0 = arith.constant 0 : i32
    return %arg0, %c0_i32 : i32, i32
  }
  func.func @transform_3(%arg0: i32, %arg1: i32) -> (i32, i32) {
    %c0_i32 = arith.constant 0 : i32
    return %arg0, %arg1 : i32, i32
  }
}

</mosaic_0001>

<llo_original>
// kernel: tpu_custom_call.1
$region0: #{tpu_custom_call.1}
  #allocation0 [shape = 'u32[]', space=smem, size = 0x4, offset = 0x4, fixed_abs, tag = 'smem constant byte address 0x4 - core index']
  #allocation1 [shape = 'u32[144,128]{1,0:T(1,128)}', space=vmem, size = 0x12000, scoped, tag = 'internal scratch']
  %s0 = inlined_call_operand.vmem [shape: f32[8,256], index: 0, kind: input, shape index: {}]
  %s1 = inlined_call_operand.vmem [shape: f32[8,1], index: 1, kind: input, shape index: {}]
  %s2 = inlined_call_operand.vmem [shape: f32[8,1], index: 2, kind: input, shape index: {}]
  %s3 = inlined_call_operand.hbm [shape: f32[8,256], index: 3, kind: output, shape index: {}]
  %s4 = sld [smem:[#allocation0]]
  $region22: #{tpu_custom_call.1} parent=0
    _
  %s6 = ssub.s32 1, %s4
  %s7 = scalar_select 0, %s6, %s4
  $region1: #{tpu_custom_call.1} parent=0
    #allocation2 [shape = 'u8[8192]{0}', space=vmem, size = 0x2000, scoped, tag = 'output window, operand 0, single buffered']
    #allocation3 [shape = 's32[1]{0}', space=sflag, size = 0x4, scoped, tag = 'scoped memory for tpu_custom_call.1']
    %8 = vsyncpa [#allocation3], 0
    // Predicated region
    $region2: #{tpu_custom_call.1} parent=1 // pred_check
      _
    $region3: #{tpu_custom_call.1} parent=1 // pred_check_branch
      %10 = sbr.rel (0) target = $region5
    $region4: #{tpu_custom_call.1} parent=1 // pred_region
      _
    $region5: #{tpu_custom_call.1} parent=1 // pred_fallthru
      _
    // Predicated region
    $region6: #{tpu_custom_call.1} parent=1 // pred_check
      _
    $region7: #{tpu_custom_call.1} parent=1 // pred_check_branch
      %12 = sbr.rel (0) target = $region9
    $region8: #{tpu_custom_call.1} parent=1 // pred_region
      _
    $region9: #{tpu_custom_call.1} parent=1 // pred_fallthru
      _
    // Predicated region
    $region10: #{tpu_custom_call.1} parent=1 // pred_check
      _
    $region11: #{tpu_custom_call.1} parent=1 // pred_check_branch
      %14 = sbr.rel (0) target = $region13
    $region12: #{tpu_custom_call.1} parent=1 // pred_region
      _
    $region13: #{tpu_custom_call.1} parent=1 // pred_fallthru
      _
    %v15 = vld [vmem:[%s0] sm:$0xff]
    %v16 = vld [vmem:[%s0 + $0x8] sm:$0xff]
    %v17 = vld [vmem:[%s1] sm:$0xff]
    %19 = vset.pattern.permute.xlu0 0
    %20 = vperm.xlu0 %19, %v17
    %v21 = vpop.permute.xlu0 %20
    %v23 = vmul.f32 %v21, %v15
    %v24 = vmul.f32 %v21, %v16
    %v25 = vand.u32 2147483647, %v23
    %vm26 = vcmp.le.f32.partialorder %v25, 0.7853982
    %vm27 = vcmp.lt.s32.totalorder %v23, 0
    %v28 = vand.u32 %v23, 2139095040
    %v29 = vshrl.u32 %v28, 23
    %v30 = vsub.s32 %v29, 127
    %v31 = vand.u32 2147483647, %v23
    %v32 = vand.u32 %v31, 8388607
    %v33 = vor.u32 %v32, 8388608
    %v34 = vsub.s32 0, %v33
    %v35 = vadd.s32 %v30, 1
    %vm36 = vcmp.gt.s32.totalorder %v35, 0
    %v37 = vsel %vm36, %v35, 0
    %v38 = vshrl.u32 %v37, 5
    %v39 = vand.u32 %v37, 31
    %v40 = vsub.s32 32, %v39
    %v41 = vshrl.u32 683565275, %v40
    %v42 = vshll.u32 683565275, %v39
    %v43 = vshrl.u32 2475754826, %v40
    %v44 = vor.u32 %v42, %v43
    %v45 = vshll.u32 2475754826, %v39
    %v46 = vshrl.u32 2131351028, %v40
    %v47 = vor.u32 %v45, %v46
    %v48 = vshll.u32 2131351028, %v39
    %v49 = vshrl.u32 2102212464, %v40
    %v50 = vor.u32 %v48, %v49
    %v51 = vshll.u32 2102212464, %v39
    %v52 = vshrl.u32 920167782, %v40
    %v53 = vor.u32 %v51, %v52
    %v54 = vshll.u32 920167782, %v39
    %v55 = vshrl.u32 1326507024, %v40
    %v56 = vor.u32 %v54, %v55
    %vm57 = vcmp.lt.s32.totalorder %v38, 1
    %vm58 = vcmp.lt.s32.totalorder %v38, 2
    %vm59 = vcmp.lt.s32.totalorder %v38, 3
    %vm60 = vcmp.lt.s32.totalorder %v38, 4
    %v61 = vsel %vm57, %v41, %v44
    %v62 = vsel %vm60, %v50, 2102212464
    %v63 = vsel %vm59, %v47, %v62
    %v64 = vsel %vm58, %v61, %v63
    %v65 = vsel %vm57, %v44, %v47
    %v66 = vsel %vm60, %v53, 920167782
    %v67 = vsel %vm59, %v50, %v66
    %v68 = vsel %vm58, %v65, %v67
    %v69 = vsel %vm57, %v47, %v50
    %v70 = vsel %vm60, %v56, 1326507024
    %v71 = vsel %vm59, %v53, %v70
    %v72 = vsel %vm58, %v69, %v71
    %v73 = vshll.u32 %v33, 8
    %v74 = vmul.u32.u64.compose %v73, %v72
    %v75 = vextract.low.u32 %v74
    %v76 = vextract.high.u32 %v74
    %v77 = vmul.u32.u64.compose %v73, %v68
    %v78 = vextract.low.u32 %v77
    %v79 = vextract.high.u32 %v77
    %v80 = vmul.u32 %v73, %v64
    %v81 = vadd.s32 %v76, %v78
    %vm82 = vc.u32 %v76, %v78
    %v83 = vadd.s32 %v79, 1
    %v84 = vsel %vm82, %v83, %v79
    %v85 = vadd.s32 %v80, %v84
    %v86 = vadd.s32 %v85, 536870912
    %v87 = vshrl.u32 %v86, 30
    %v88 = vshll.u32 %v87, 30
    %v89 = vsub.s32 %v85, %v88
    %vm90 = vcmp.lt.s32.totalorder %v89, 0
    %v91 = vsub.s32 0, %v89
    %v92 = vsel %vm90, %v91, %v89
    %v93 = vclz %v92
    %v94 = vsub.s32 %v93, 2
    %vm95 = vcmp.gt.s32.totalorder 0, %v94
    %v96 = vsel %vm95, 0, %v94
    %v97 = vsub.s32 32, %v96
    %v98 = vshll.u32 %v89, %v96
    %v99 = vshrl.u32 %v81, %v97
    %v100 = vor.u32 %v98, %v99
    %v101 = vsub.s32 4294967266, %v96
    %v102 = vadd.s32 %v101, 127
    %v103 = vshll.u32 %v102, 23
    %v104 = vor.u32 4788187, %v103
    %v105 = vand.u32 2147483647, %v104
    %v107 = vcvt.s32.f32 %v100
    %v108 = vmul.f32 %v107, %v105
    %v109 = vxor.u32 %v108, 2147483648
    %v110 = vsel %vm27, %v109, %v108
    %v111 = vsub.s32 4, %v87
    %v112 = vsel %vm27, %v111, %v87
    %v113 = vsel %vm26, %v23, %v110
    %v114 = vsel %vm26, 0, %v112
    %v115 = vcosq.f32.pop %v113
    %v116 = vsinq.f32.pop %v113
    %vm117 = vweird.f32 %v23
    %v118 = vadd.s32 %v114, 3
    %v119 = vand.u32 %v118, 3
    %vm120 = vcmp.lt.s32.totalorder %v119, 2
    %vm121 = vcmp.eq.s32.totalorder %v119, 0
    %v122 = vxor.u32 %v116, 2147483648
    %v123 = vsel %vm121, %v115, %v122
    %vm124 = vcmp.eq.s32.totalorder %v119, 2
    %v125 = vxor.u32 %v115, 2147483648
    %v126 = vsel %vm124, %v125, %v116
    %v127 = vsel %vm120, %v123, %v126
    %v128 = vsel %vm117, nan, %v127
    %v129 = vand.u32 2147483647, %v24
    %vm130 = vcmp.le.f32.partialorder %v129, 0.7853982
    %vm131 = vcmp.lt.s32.totalorder %v24, 0
    %v132 = vand.u32 %v24, 2139095040
    %v133 = vshrl.u32 %v132, 23
    %v134 = vsub.s32 %v133, 127
    %v135 = vand.u32 2147483647, %v24
    %v136 = vand.u32 %v135, 8388607
    %v137 = vor.u32 %v136, 8388608
    %v138 = vsub.s32 0, %v137
    %v139 = vadd.s32 %v134, 1
    %vm140 = vcmp.gt.s32.totalorder %v139, 0
    %v141 = vsel %vm140, %v139, 0
    %v142 = vshrl.u32 %v141, 5
    %v143 = vand.u32 %v141, 31
    %v144 = vsub.s32 32, %v143
    %v145 = vshrl.u32 683565275, %v144
    %v146 = vshll.u32 683565275, %v143
    %v147 = vshrl.u32 2475754826, %v144
    %v148 = vor.u32 %v146, %v147
    %v149 = vshll.u32 2475754826, %v143
    %v150 = vshrl.u32 2131351028, %v144
    %v151 = vor.u32 %v149, %v150
    %v152 = vshll.u32 2131351028, %v143
    %v153 = vshrl.u32 2102212464, %v144
    %v154 = vor.u32 %v152, %v153
    %v155 = vshll.u32 2102212464, %v143
    %v156 = vshrl.u32 920167782, %v144
    %v157 = vor.u32 %v155, %v156
    %v158 = vshll.u32 920167782, %v143
    %v159 = vshrl.u32 1326507024, %v144
    %v160 = vor.u32 %v158, %v159
    %vm161 = vcmp.lt.s32.totalorder %v142, 1
    %vm162 = vcmp.lt.s32.totalorder %v142, 2
    %vm163 = vcmp.lt.s32.totalorder %v142, 3
    %vm164 = vcmp.lt.s32.totalorder %v142, 4
    %v165 = vsel %vm161, %v145, %v148
    %v166 = vsel %vm164, %v154, 2102212464
    %v167 = vsel %vm163, %v151, %v166
    %v168 = vsel %vm162, %v165, %v167
    %v169 = vsel %vm161, %v148, %v151
    %v170 = vsel %vm164, %v157, 920167782
    %v171 = vsel %vm163, %v154, %v170
    %v172 = vsel %vm162, %v169, %v171
    %v173 = vsel %vm161, %v151, %v154
    %v174 = vsel %vm164, %v160, 1326507024
    %v175 = vsel %vm163, %v157, %v174
    %v176 = vsel %vm162, %v173, %v175
    %v177 = vshll.u32 %v137, 8
    %v178 = vmul.u32.u64.compose %v177, %v176
    %v179 = vextract.low.u32 %v178
    %v180 = vextract.high.u32 %v178
    %v181 = vmul.u32.u64.compose %v177, %v172
    %v182 = vextract.low.u32 %v181
    %v183 = vextract.high.u32 %v181
    %v184 = vmul.u32 %v177, %v168
    %v185 = vadd.s32 %v180, %v182
    %vm186 = vc.u32 %v180, %v182
    %v187 = vadd.s32 %v183, 1
    %v188 = vsel %vm186, %v187, %v183
    %v189 = vadd.s32 %v184, %v188
    %v190 = vadd.s32 %v189, 536870912
    %v191 = vshrl.u32 %v190, 30
    %v192 = vshll.u32 %v191, 30
    %v193 = vsub.s32 %v189, %v192
    %vm194 = vcmp.lt.s32.totalorder %v193, 0
    %v195 = vsub.s32 0, %v193
    %v196 = vsel %vm194, %v195, %v193
    %v197 = vclz %v196
    %v198 = vsub.s32 %v197, 2
    %vm199 = vcmp.gt.s32.totalorder 0, %v198
    %v200 = vsel %vm199, 0, %v198
    %v201 = vsub.s32 32, %v200
    %v202 = vshll.u32 %v193, %v200
    %v203 = vshrl.u32 %v185, %v201
    %v204 = vor.u32 %v202, %v203
    %v205 = vsub.s32 4294967266, %v200
    %v206 = vadd.s32 %v205, 127
    %v207 = vshll.u32 %v206, 23
    %v208 = vor.u32 4788187, %v207
    %v209 = vand.u32 2147483647, %v208
    %v211 = vcvt.s32.f32 %v204
    %v212 = vmul.f32 %v211, %v209
    %v213 = vxor.u32 %v212, 2147483648
    %v214 = vsel %vm131, %v213, %v212
    %v215 = vsub.s32 4, %v191
    %v216 = vsel %vm131, %v215, %v191
    %v217 = vsel %vm130, %v24, %v214
    %v218 = vsel %vm130, 0, %v216
    %v219 = vcosq.f32.pop %v217
    %v220 = vsinq.f32.pop %v217
    %vm221 = vweird.f32 %v24
    %v222 = vadd.s32 %v218, 3
    %v223 = vand.u32 %v222, 3
    %vm224 = vcmp.lt.s32.totalorder %v223, 2
    %vm225 = vcmp.eq.s32.totalorder %v223, 0
    %v226 = vxor.u32 %v220, 2147483648
    %v227 = vsel %vm225, %v219, %v226
    %vm228 = vcmp.eq.s32.totalorder %v223, 2
    %v229 = vxor.u32 %v219, 2147483648
    %v230 = vsel %vm228, %v229, %v220
    %v231 = vsel %vm224, %v227, %v230
    %v232 = vsel %vm221, nan, %v231
    %v233 = vmul.f32 %v128, %v128
    %v234 = vmul.f32 %v232, %v232
    %v235 = vld [vmem:[%s2] sm:$0xff]
    %237 = vset.pattern.permute.xlu0 0
    %238 = vperm.xlu0 %237, %v235
    %v239 = vpop.permute.xlu0 %238
    %v241 = vmul.f32 %v233, %v239
    %v242 = vmul.f32 %v234, %v239
    %v243 = vadd.f32 %v15, %v241
    %v244 = vadd.f32 %v16, %v242
    %245 = vst [vmem:[#allocation2] sm:$0xff] %v243
    %246 = vst [vmem:[#allocation2 + $0x8] sm:$0xff] %v244
    // Predicated region
    $region14: #{tpu_custom_call.1} parent=1 // pred_check
      _
    $region15: #{tpu_custom_call.1} parent=1 // pred_check_branch
      %248 = sbr.rel (0) target = $region17
    $region16: #{tpu_custom_call.1} parent=1 // pred_region
      %s250 = ssub.s32 256, 256
      %251 = vsyncadd [#allocation3], %s250
      %s253 = sshll.u32 [#allocation2], 4
      %s254 = int_to_ptr.vmem [resolvable:$true] %s253
      %256 = dma.vmem_to_hbm [thread:$0]  %s254, 256, %s3, [#allocation3]
    $region17: #{tpu_custom_call.1} parent=1 // pred_fallthru
      _
    // Predicated region
    $region18: #{tpu_custom_call.1} parent=1 // pred_check
      _
    $region19: #{tpu_custom_call.1} parent=1 // pred_check_branch
      %258 = sbr.rel (0) target = $region21
    $region20: #{tpu_custom_call.1} parent=1 // pred_region
      %259 = dma.done [#allocation3], 256
    $region21: #{tpu_custom_call.1} parent=1 // pred_fallthru
      _
    %260 = vsyncpa [#allocation3], 1

</llo_original>
